<compile_context>
chip_gen: v5e
topology: v5e:2x2
jax: 0.10.0
libtpu: 0.0.40
codegen_flags: <defaults>
</compile_context>

<pallas_src>
import math

import jax
import jax.numpy as jnp
from jax.experimental import pallas as pl
from jax.experimental.pallas import tpu as pltpu


def _round_up(x, m):
    return ((x + m - 1) // m) * m


def _pick_divisor_tile(h, target):
    """Largest multiple of 128 that divides h and is <= target (>= 128)."""
    best = 128
    t = 256
    while t <= min(h, target):
        if h % t == 0:
            best = t
        t += 128
    return best


def _vmem_capacity_bytes():
    try:
        info = pltpu.get_tpu_info()
        cap = getattr(info, "vmem_capacity_bytes", None)
        if cap:
            return int(cap)
    except Exception:
        pass
    return 64 << 20  # conservative: v7x per-TensorCore VMEM


def ffn_kernel(x_ref, w1_ref, b1_ref, w2_ref, b2_ref, o_ref, h_ref, acc_ref):
    """Grid = (row tile i, linear2 output-column tile k, hidden tile j).

    k == 0 sweep over j : h_j = GELU(x @ W1[j]^T + b1[j]) -> bf16 h scratch.
    every (k, j)        : acc += h_j @ W2[k, j]^T          (small f32 acc).
    j == last           : out[i, k] = acc + b2[k].
    """
    k = pl.program_id(1)
    j = pl.program_id(2)

    @pl.when(j == 0)
    def _init():
        acc_ref[...] = jnp.zeros_like(acc_ref)

    @pl.when(k == 0)
    def _linear1():
        # Full-K matmul over H (bf16 operands, f32 MXU accumulation).
        h = jax.lax.dot_general(
            x_ref[...], w1_ref[...],
            dimension_numbers=(((1,), (1,)), ((), ())),
            preferred_element_type=jnp.float32,
        ) + b1_ref[...]
        # Exact (erf) GELU in f32 — parity with torch.nn.GELU() default.
        h = 0.5 * h * (1.0 + jax.lax.erf(h * jnp.float32(0.7071067811865476)))
        h_ref[j] = h.astype(h_ref.dtype)

    # linear2 partial contraction for output tile k over hidden tile j.
    acc_ref[...] += jax.lax.dot_general(
        h_ref[j], w2_ref[...],
        dimension_numbers=(((1,), (1,)), ((), ())),
        preferred_element_type=jnp.float32,
    )

    @pl.when(j == pl.num_programs(2) - 1)
    def _finalize():
        # TODO(synk): dropout is stateful/training-only; identity in eval mode.
        o_ref[...] = (acc_ref[...] + b2_ref[...]).astype(o_ref.dtype)


def ffn_forward(particles, w1, b1, w2, b2, *, tm=512, tn=512, tn_out=256,
                compute_dtype=jnp.bfloat16):
    """particles: [..., H]; w1/w2: (H_out, H_in) PyTorch layout; b1/b2: (H,)."""
    orig_shape = particles.shape
    H = orig_shape[-1]
    assert H % 128 == 0, "hidden size must be a multiple of 128 (lane width)"

    out_dtype = particles.dtype
    # Pre-cast x in the wrapper: halves x HBM traffic and the resident VMEM tile.
    x2d = particles.reshape(-1, H).astype(compute_dtype)
    M = x2d.shape[0]

    # Hidden tiles: tn = linear1 output / linear2 contraction tile,
    # tn_out = linear2 output-column tile.  Both divide H.
    tn = _pick_divisor_tile(H, tn)
    tn_out = _pick_divisor_tile(H, tn_out)

    # Row tile: multiple of 16 (bf16 sublane packing), large enough to beat the
    # weight-streaming roofline.  If a single row tile would cover all of M but
    # M is large, split into two so v7x's 2nd TensorCore gets work.
    tm = max(16, min(tm, _round_up(M, 16)))
    if _round_up(M, tm) == tm and M >= 512:
        tm = _round_up(-(-M // 2), 16)

    x_b = jnp.dtype(compute_dtype).itemsize
    w_b = jnp.dtype(compute_dtype).itemsize
    o_b = jnp.dtype(out_dtype).itemsize

    def vmem_need(tm_):
        return (2 * tm_ * H * x_b          # x row tile (double buffered)
                + 2 * tn * H * w_b         # W1 row-block buffers
                + 2 * tn_out * tn * w_b    # W2 tile buffers
                + 2 * (tn + tn_out) * 4    # biases
                + 2 * tm_ * tn_out * o_b   # output tile buffers
                + tm_ * H * w_b            # bf16 intermediate h scratch
                + tm_ * tn_out * 4)        # small f32 accumulator

    cap = _vmem_capacity_bytes()
    budget = cap - (8 << 20)               # headroom for compiler scratch
    while vmem_need(tm) > budget and tm > 64:
        tm = max(64, (tm // 32) * 16)      # halve, keep a multiple of 16
    vmem_limit = int(min(max(vmem_need(tm) + (4 << 20), 32 << 20), cap - (2 << 20)))

    M_pad = _round_up(M, tm)
    if M_pad != M:
        x2d = jnp.pad(x2d, ((0, M_pad - M), (0, 0)))

    nj = H // tn
    grid = (M_pad // tm, H // tn_out, nj)

    # Weights in the bf16 MXU dtype; biases stay f32 for the VPU add.
    w1_c = w1.astype(compute_dtype)
    w2_c = w2.astype(compute_dtype)
    b1_2d = b1.reshape(1, H).astype(jnp.float32)
    b2_2d = b2.reshape(1, H).astype(jnp.float32)

    def w1_map(i, k, j):
        # W1 row-block j is only consumed on the k == 0 sweep; keep the block
        # index constant afterwards so the pipeliner stops re-streaming W1.
        return (jnp.where(k == 0, j, 0), 0)

    cost = pl.CostEstimate(
        flops=4 * M * H * H,                 # two H x H matmuls
        transcendentals=M * H,               # one erf per hidden element
        bytes_accessed=M * H * (x_b + o_b) + 2 * H * H * w_b + 8 * H,
    )

    out = pl.pallas_call(
        ffn_kernel,
        out_shape=jax.ShapeDtypeStruct((M_pad, H), out_dtype),
        grid_spec=pltpu.PrefetchScalarGridSpec(
            num_scalar_prefetch=0,
            grid=grid,
            in_specs=[
                pl.BlockSpec((tm, H), lambda i, k, j: (i, 0)),        # x (resident over k, j)
                pl.BlockSpec((tn, H), w1_map),                        # W1 rows  (out, in) layout
                pl.BlockSpec((1, tn), lambda i, k, j: (0, j)),        # b1 tile
                pl.BlockSpec((tn_out, tn), lambda i, k, j: (k, j)),   # W2 tile  (out, in) layout
                pl.BlockSpec((1, tn_out), lambda i, k, j: (0, k)),    # b2 tile
            ],
            out_specs=pl.BlockSpec((tm, tn_out), lambda i, k, j: (i, k)),
            scratch_shapes=[
                pltpu.VMEM((nj, tm, tn), compute_dtype),   # bf16 intermediate h
                pltpu.VMEM((tm, tn_out), jnp.float32),     # small linear2 accumulator
            ],
        ),
        compiler_params=pltpu.CompilerParams(
            dimension_semantics=("parallel", "arbitrary", "arbitrary"),
            vmem_limit_bytes=vmem_limit,
        ),
        cost_estimate=cost,
    )(x2d, w1_c, b1_2d, w2_c, b2_2d)

    if M_pad != M:
        out = out[:M]
    return out.reshape(orig_shape)


if __name__ == "__main__":
    batch, seq, hidden = 2, 8, 128

    key = jax.random.PRNGKey(0)
    kx, kw1, kb1, kw2, kb2 = jax.random.split(key, 5)

    # Deterministic parameter init (Linear(hidden, hidden) shapes, torch layout).
    bound = 1.0 / math.sqrt(hidden)
    w1 = jax.random.uniform(kw1, (hidden, hidden), jnp.float32, -bound, bound)
    b1 = jax.random.uniform(kb1, (hidden,), jnp.float32, -bound, bound)
    w2 = jax.random.uniform(kw2, (hidden, hidden), jnp.float32, -bound, bound)
    b2 = jax.random.uniform(kb2, (hidden,), jnp.float32, -bound, bound)

    particles = jax.random.normal(kx, (batch, seq, hidden), jnp.float32)

    out = ffn_forward(particles, w1, b1, w2, b2)
    out = jax.block_until_ready(out)

    # Pure-JAX f32 reference (eval-mode dropout = identity, erf GELU).
    h_ref = particles @ w1.T + b1
    h_ref = 0.5 * h_ref * (1.0 + jax.lax.erf(h_ref / jnp.sqrt(2.0)))
    ref = h_ref @ w2.T + b2

    assert out.shape == (batch, seq, hidden)
    # bf16 MXU operands (f32 accumulation) -> relaxed tolerance vs f32 reference.
    assert jnp.allclose(out, ref, atol=3e-2, rtol=3e-2), float(
        jnp.max(jnp.abs(out - ref)))

    print("KERNEL_OK")
</pallas_src>

<mosaic_0001>
module attributes {stable_mosaic.version = 11 : i64} {
  func.func @ffn_kernel(%arg0: i32, %arg1: i32, %arg2: i32, %arg3: memref<16x128xbf16, #tpu.memory_space<vmem>>, %arg4: memref<128x128xbf16, #tpu.memory_space<vmem>>, %arg5: memref<1x128xf32, #tpu.memory_space<vmem>>, %arg6: memref<128x128xbf16, #tpu.memory_space<vmem>>, %arg7: memref<1x128xf32, #tpu.memory_space<vmem>>, %arg8: memref<16x128xf32, #tpu.memory_space<vmem>>, %arg9: memref<1x16x128xbf16, #tpu.memory_space<vmem>>, %arg10: memref<16x128xf32, #tpu.memory_space<vmem>>) attributes {dimension_semantics = [#tpu.dimension_semantics<parallel>, #tpu.dimension_semantics<arbitrary>, #tpu.dimension_semantics<arbitrary>], iteration_bounds = array<i64: 1, 1, 1>, scalar_prefetch = 0 : i64, scratch_operands = 2 : i64, tpu.core_type = #tpu.core_type<tc>, window_params = [{transform_indices = @transform_0, window_bounds = array<i64: 16, 128>}, {transform_indices = @transform_1, window_bounds = array<i64: 128, 128>}, {transform_indices = @transform_2, window_bounds = array<i64: 1, 128>}, {transform_indices = @transform_3, window_bounds = array<i64: 128, 128>}, {transform_indices = @transform_4, window_bounds = array<i64: 1, 128>}, {transform_indices = @transform_5, window_bounds = array<i64: 16, 128>}]} {
    %c0_i32 = arith.constant 0 : i32
    %0 = arith.cmpi eq, %arg2, %c0_i32 : i32
    %1 = arith.extui %0 : i1 to i32
    %c0_i32_0 = arith.constant 0 : i32
    %2 = arith.cmpi ne, %1, %c0_i32_0 : i32
    scf.if %2 {
      %cst_12 = arith.constant 0.000000e+00 : f32
      %17 = vector.broadcast %cst_12 : f32 to vector<16x128xf32>
      %c0_13 = arith.constant 0 : index
      %c0_14 = arith.constant 0 : index
      %18 = vector.load %arg10[%c0_13, %c0_14] : memref<16x128xf32, #tpu.memory_space<vmem>>, vector<16x128xf32>
      tpu.vector_store %arg10[%c0_13, %c0_14], %17 {strides = array<i32>} : memref<16x128xf32, #tpu.memory_space<vmem>>, vector<16x128xf32>,
    } else {
    }
    %c0_i32_1 = arith.constant 0 : i32
    %3 = arith.cmpi eq, %arg1, %c0_i32_1 : i32
    %4 = arith.extui %3 : i1 to i32
    %c0_i32_2 = arith.constant 0 : i32
    %5 = arith.cmpi ne, %4, %c0_i32_2 : i32
    scf.if %5 {
      %c0_12 = arith.constant 0 : index
      %c0_13 = arith.constant 0 : index
      %17 = vector.load %arg3[%c0_12, %c0_13] : memref<16x128xbf16, #tpu.memory_space<vmem>>, vector<16x128xbf16>
      %c0_14 = arith.constant 0 : index
      %c0_15 = arith.constant 0 : index
      %18 = vector.load %arg4[%c0_14, %c0_15] : memref<128x128xbf16, #tpu.memory_space<vmem>>, vector<128x128xbf16>
      %cst_16 = arith.constant dense<0.000000e+00> : vector<16x128xf32>
      %19 = tpu.matmul %17, %18, %cst_16 {dimension_numbers = #tpu.dot_dimension_numbers<[1], [1], [0], [0], [0, 0, 1, 0], [], []>} : vector<16x128xbf16>, vector<128x128xbf16>, vector<16x128xf32> -> vector<16x128xf32>
      %c0_17 = arith.constant 0 : index
      %c0_18 = arith.constant 0 : index
      %20 = vector.load %arg5[%c0_17, %c0_18] : memref<1x128xf32, #tpu.memory_space<vmem>>, vector<1x128xf32>
      %21 = vector.broadcast %20 : vector<1x128xf32> to vector<16x128xf32>
      %22 = arith.addf %19, %21 : vector<16x128xf32>
      %cst_19 = arith.constant 5.000000e-01 : f32
      %23 = vector.broadcast %cst_19 : f32 to vector<16x128xf32>
      %24 = arith.mulf %23, %22 : vector<16x128xf32>
      %cst_20 = arith.constant 0.707106769 : f32
      %25 = vector.broadcast %cst_20 : f32 to vector<16x128xf32>
      %26 = arith.mulf %22, %25 : vector<16x128xf32>
      %27 = math.erf %26 : vector<16x128xf32>
      %cst_21 = arith.constant 1.000000e+00 : f32
      %28 = vector.broadcast %cst_21 : f32 to vector<16x128xf32>
      %29 = arith.addf %28, %27 : vector<16x128xf32>
      %30 = arith.mulf %24, %29 : vector<16x128xf32>
      %31 = arith.truncf %30 : vector<16x128xf32> to vector<16x128xbf16>
      %32 = arith.index_cast %arg2 : i32 to index
      %c0_22 = arith.constant 0 : index
      %c0_23 = arith.constant 0 : index
      %33 = vector.load %arg9[%32, %c0_22, %c0_23] : memref<1x16x128xbf16, #tpu.memory_space<vmem>>, vector<1x16x128xbf16>
      %34 = vector.shape_cast %33 : vector<1x16x128xbf16> to vector<16x128xbf16>
      %35 = vector.shape_cast %31 : vector<16x128xbf16> to vector<1x16x128xbf16>
      tpu.vector_store %arg9[%32, %c0_22, %c0_23], %35 {strides = array<i32>} : memref<1x16x128xbf16, #tpu.memory_space<vmem>>, vector<1x16x128xbf16>,
    } else {
    }
    %c0 = arith.constant 0 : index
    %c0_3 = arith.constant 0 : index
    %6 = vector.load %arg10[%c0, %c0_3] : memref<16x128xf32, #tpu.memory_space<vmem>>, vector<16x128xf32>
    %7 = arith.index_cast %arg2 : i32 to index
    %c0_4 = arith.constant 0 : index
    %c0_5 = arith.constant 0 : index
    %8 = vector.load %arg9[%7, %c0_4, %c0_5] : memref<1x16x128xbf16, #tpu.memory_space<vmem>>, vector<1x16x128xbf16>
    %9 = vector.shape_cast %8 : vector<1x16x128xbf16> to vector<16x128xbf16>
    %c0_6 = arith.constant 0 : index
    %c0_7 = arith.constant 0 : index
    %10 = vector.load %arg6[%c0_6, %c0_7] : memref<128x128xbf16, #tpu.memory_space<vmem>>, vector<128x128xbf16>
    %cst = arith.constant dense<0.000000e+00> : vector<16x128xf32>
    %11 = tpu.matmul %9, %10, %cst {dimension_numbers = #tpu.dot_dimension_numbers<[1], [1], [0], [0], [0, 0, 1, 0], [], []>} : vector<16x128xbf16>, vector<128x128xbf16>, vector<16x128xf32> -> vector<16x128xf32>
    %12 = arith.addf %6, %11 : vector<16x128xf32>
    %c0_8 = arith.constant 0 : index
    %c0_9 = arith.constant 0 : index
    %13 = vector.load %arg10[%c0_8, %c0_9] : memref<16x128xf32, #tpu.memory_space<vmem>>, vector<16x128xf32>
    tpu.vector_store %arg10[%c0_8, %c0_9], %12 {strides = array<i32>} : memref<16x128xf32, #tpu.memory_space<vmem>>, vector<16x128xf32>,
    %c0_i32_10 = arith.constant 0 : i32
    %14 = arith.cmpi eq, %arg2, %c0_i32_10 : i32
    %15 = arith.extui %14 : i1 to i32
    %c0_i32_11 = arith.constant 0 : i32
    %16 = arith.cmpi ne, %15, %c0_i32_11 : i32
    scf.if %16 {
      %c0_12 = arith.constant 0 : index
      %c0_13 = arith.constant 0 : index
      %17 = vector.load %arg10[%c0_12, %c0_13] : memref<16x128xf32, #tpu.memory_space<vmem>>, vector<16x128xf32>
      %c0_14 = arith.constant 0 : index
      %c0_15 = arith.constant 0 : index
      %18 = vector.load %arg7[%c0_14, %c0_15] : memref<1x128xf32, #tpu.memory_space<vmem>>, vector<1x128xf32>
      %19 = vector.broadcast %18 : vector<1x128xf32> to vector<16x128xf32>
      %20 = arith.addf %17, %19 : vector<16x128xf32>
      %c0_16 = arith.constant 0 : index
      %c0_17 = arith.constant 0 : index
      %21 = vector.load %arg8[%c0_16, %c0_17] : memref<16x128xf32, #tpu.memory_space<vmem>>, vector<16x128xf32>
      tpu.vector_store %arg8[%c0_16, %c0_17], %20 {strides = array<i32>} : memref<16x128xf32, #tpu.memory_space<vmem>>, vector<16x128xf32>,
    } else {
    }
    return
  }
  func.func @transform_0(%arg0: i32, %arg1: i32, %arg2: i32) -> (i32, i32) {
    %c0_i32 = arith.constant 0 : i32
    %c0_i32_0 = arith.constant 0 : i32
    return %arg0, %c0_i32 : i32, i32
  }
  func.func @transform_1(%arg0: i32, %arg1: i32, %arg2: i32) -> (i32, i32) {
    %c0_i32 = arith.constant 0 : i32
    %0 = arith.cmpi eq, %arg1, %c0_i32 : i32
    %c0_i32_0 = arith.constant 0 : i32
    %1 = arith.select %0, %arg2, %c0_i32_0 : i32
    %c0_i32_1 = arith.constant 0 : i32
    %c0_i32_2 = arith.constant 0 : i32
    return %1, %c0_i32_1 : i32, i32
  }
  func.func @transform_2(%arg0: i32, %arg1: i32, %arg2: i32) -> (i32, i32) {
    %c0_i32 = arith.constant 0 : i32
    %c0_i32_0 = arith.constant 0 : i32
    return %c0_i32, %arg2 : i32, i32
  }
  func.func @transform_3(%arg0: i32, %arg1: i32, %arg2: i32) -> (i32, i32) {
    %c0_i32 = arith.constant 0 : i32
    return %arg1, %arg2 : i32, i32
  }
  func.func @transform_4(%arg0: i32, %arg1: i32, %arg2: i32) -> (i32, i32) {
    %c0_i32 = arith.constant 0 : i32
    %c0_i32_0 = arith.constant 0 : i32
    return %c0_i32, %arg1 : i32, i32
  }
  func.func @transform_5(%arg0: i32, %arg1: i32, %arg2: i32) -> (i32, i32) {
    %c0_i32 = arith.constant 0 : i32
    return %arg0, %arg1 : i32, i32
  }
}

</mosaic_0001>

<llo_original>
// kernel: tpu_custom_call.1
$region0: #{tpu_custom_call.1}
  #allocation0 [shape = 'u32[]', space=smem, size = 0x4, offset = 0x4, fixed_abs, tag = 'smem constant byte address 0x4 - core index']
  #allocation1 [shape = 'u32[72,128]{1,0:T(1,128)}', space=vmem, size = 0x9000, scoped, tag = 'internal scratch']
  #allocation2 [shape = 'bf16[1,16,128]{2,1,0:T(8,128)(2,1)}', space=vmem, size = 0x1000, scoped, tag = 'scratch operand']
  #allocation3 [shape = 'f32[16,128]{1,0:T(8,128)}', space=vmem, size = 0x2000, scoped, tag = 'scratch operand']
  %s0 = inlined_call_operand.hbm [shape: bf16[16,128], index: 0, kind: input, shape index: {}]
  %s1 = inlined_call_operand.hbm [shape: bf16[128,128], index: 1, kind: input, shape index: {}]
  %s2 = inlined_call_operand.vmem [shape: f32[1,128], index: 2, kind: input, shape index: {}]
  %s3 = inlined_call_operand.hbm [shape: bf16[128,128], index: 3, kind: input, shape index: {}]
  %s4 = inlined_call_operand.vmem [shape: f32[1,128], index: 4, kind: input, shape index: {}]
  %s5 = inlined_call_operand.hbm [shape: f32[16,128], index: 5, kind: output, shape index: {}]
  %s6 = sld [smem:[#allocation0]]
  $region54: #{tpu_custom_call.1} parent=0
    _
  %s8 = ssub.s32 1, %s6
  %s9 = scalar_select 0, %s8, %s6
  $region1: #{tpu_custom_call.1} parent=0
    #allocation4 [shape = 'u8[4096]{0}', space=vmem, size = 0x1000, scoped, tag = 'input window, operand 0, single buffered']
    #allocation5 [shape = 's32[1]{0}', space=sflag, size = 0x4, scoped, tag = 'scoped memory for tpu_custom_call.1']
    #allocation6 [shape = 's32[1]{0}', space=sflag, size = 0x4, scoped, tag = 'scoped memory for tpu_custom_call.1']
    #allocation7 [shape = 'u8[32768]{0}', space=vmem, size = 0x8000, scoped, tag = 'input window, operand 1, single buffered']
    #allocation8 [shape = 's32[1]{0}', space=sflag, size = 0x4, scoped, tag = 'scoped memory for tpu_custom_call.1']
    #allocation9 [shape = 'u8[32768]{0}', space=vmem, size = 0x8000, scoped, tag = 'input window, operand 3, single buffered']
    #allocation10 [shape = 'u8[8192]{0}', space=vmem, size = 0x2000, scoped, tag = 'output window, operand 0, single buffered']
    %10 = vsyncpa [#allocation5], 0
    %11 = vsyncpa [#allocation8], 0
    %12 = vsyncpa [#allocation6], 0
    // Predicated region
    $region2: #{tpu_custom_call.1} parent=1 // pred_check
      _
    $region3: #{tpu_custom_call.1} parent=1 // pred_check_branch
      %14 = sbr.rel (0) target = $region5
    $region4: #{tpu_custom_call.1} parent=1 // pred_region
      %16 = vsyncadd [#allocation5], 0
      %s17 = sshll.u32 %s0, 4
      %s18 = int_to_ptr.hbm [resolvable:$true] %s17
      %s19 = sshll.u32 [#allocation4], 4
      %s20 = int_to_ptr.vmem [resolvable:$true] %s19
      %25 = dma.hbm_to_vmem [thread:$0]  %s18, 128, %s20, [#allocation5], 64, 64, 4
    $region5: #{tpu_custom_call.1} parent=1 // pred_fallthru
      _
    // Predicated region
    $region6: #{tpu_custom_call.1} parent=1 // pred_check
      _
    $region7: #{tpu_custom_call.1} parent=1 // pred_check_branch
      %27 = sbr.rel (0) target = $region9
    $region8: #{tpu_custom_call.1} parent=1 // pred_region
      %p28 = scmp.eq.s32.totalorder 0, 0
      %s29 = scalar_select %p28, 0, 0
      %s30 = smul.u32 16, %s29
      %32 = vsyncadd [#allocation8], 0
      %s33 = smul.addr %s30, 4
      %s34 = scalar_lea.hbm %s1, %s33
      %s35 = sshll.u32 %s34, 4
      %s36 = int_to_ptr.hbm [resolvable:$true] %s35
      %s37 = sshll.u32 [#allocation7], 4
      %s38 = int_to_ptr.vmem [resolvable:$true] %s37
      %43 = dma.hbm_to_vmem [thread:$0]  %s36, 1024, %s38, [#allocation8], 64, 64, 4
    $region9: #{tpu_custom_call.1} parent=1 // pred_fallthru
      _
    // Predicated region
    $region10: #{tpu_custom_call.1} parent=1 // pred_check
      _
    $region11: #{tpu_custom_call.1} parent=1 // pred_check_branch
      %45 = sbr.rel (0) target = $region13
    $region12: #{tpu_custom_call.1} parent=1 // pred_region
      _
    $region13: #{tpu_custom_call.1} parent=1 // pred_fallthru
      _
    // Predicated region
    $region14: #{tpu_custom_call.1} parent=1 // pred_check
      _
    $region15: #{tpu_custom_call.1} parent=1 // pred_check_branch
      %47 = sbr.rel (0) target = $region17
    $region16: #{tpu_custom_call.1} parent=1 // pred_region
      %49 = vsyncadd [#allocation8], 0
      %s50 = sshll.u32 %s3, 4
      %s51 = int_to_ptr.hbm [resolvable:$true] %s50
      %s52 = sshll.u32 [#allocation9], 4
      %s53 = int_to_ptr.vmem [resolvable:$true] %s52
      %58 = dma.hbm_to_vmem [thread:$0]  %s51, 1024, %s53, [#allocation8], 64, 64, 4
    $region17: #{tpu_custom_call.1} parent=1 // pred_fallthru
      _
    // Predicated region
    $region18: #{tpu_custom_call.1} parent=1 // pred_check
      _
    $region19: #{tpu_custom_call.1} parent=1 // pred_check_branch
      %60 = sbr.rel (0) target = $region21
    $region20: #{tpu_custom_call.1} parent=1 // pred_region
      _
    $region21: #{tpu_custom_call.1} parent=1 // pred_fallthru
      _
    // Predicated region
    $region22: #{tpu_custom_call.1} parent=1 // pred_check
      _
    $region23: #{tpu_custom_call.1} parent=1 // pred_check_branch
      %62 = sbr.rel (0) target = $region25
    $region24: #{tpu_custom_call.1} parent=1 // pred_region
      %64 = dma.done [#allocation5], 128
    $region25: #{tpu_custom_call.1} parent=1 // pred_fallthru
      _
    // Predicated region
    $region26: #{tpu_custom_call.1} parent=1 // pred_check
      _
    $region27: #{tpu_custom_call.1} parent=1 // pred_check_branch
      %66 = sbr.rel (0) target = $region29
    $region28: #{tpu_custom_call.1} parent=1 // pred_region
      %68 = dma.done [#allocation8], 1024
    $region29: #{tpu_custom_call.1} parent=1 // pred_fallthru
      _
    // Predicated region
    $region30: #{tpu_custom_call.1} parent=1 // pred_check
      _
    $region31: #{tpu_custom_call.1} parent=1 // pred_check_branch
      %70 = sbr.rel (0) target = $region33
    $region32: #{tpu_custom_call.1} parent=1 // pred_region
      %72 = dma.done [#allocation8], 1024
    $region33: #{tpu_custom_call.1} parent=1 // pred_fallthru
      _
    %p73 = scmp.eq.s32.totalorder 0, 0
    %s74 = scalar_select %p73, 0, 0
    %s75 = smul.u32 16, %s74
    %p76 = scmp.eq.s32.totalorder 0, 0
    // Predicated region
    $region34: #{tpu_custom_call.1} parent=1 // pred_check
      %p77 = pneg %p76
    $region35: #{tpu_custom_call.1} parent=1 // pred_check_branch
      %79 = sbr.rel (%p77) target = $region37
    $region36: #{tpu_custom_call.1} parent=1 // pred_region
      %80 = vst [vmem:[#allocation3] sm:$0xff] 0.0
      %81 = vst [vmem:[#allocation3 + $0x8] sm:$0xff] 0.0
    $region37: #{tpu_custom_call.1} parent=1 // pred_fallthru
      _
    %p82 = scmp.eq.s32.totalorder 0, 0
    // Predicated region
    $region38: #{tpu_custom_call.1} parent=1 // pred_check
      %p83 = pneg %p82
    $region39: #{tpu_custom_call.1} parent=1 // pred_check_branch
      %85 = sbr.rel (%p83) target = $region41
    $region40: #{tpu_custom_call.1} parent=1 // pred_region
      %v86 = vld [vmem:[#allocation4] sm:$0xf]
      %v87 = vld [vmem:[#allocation4 + $0x4] sm:$0xf]
      %v88 = vld [vmem:[#allocation7] sm:$0xf]
      %v89 = vld [vmem:[#allocation7 + $0x4] sm:$0xf]
      %v90 = vld [vmem:[#allocation7 + $0x8] sm:$0xf]
      %v91 = vld [vmem:[#allocation7 + $0xc] sm:$0xf]
      %v92 = vld [vmem:[#allocation7 + $0x10] sm:$0xf]
      %v93 = vld [vmem:[#allocation7 + $0x14] sm:$0xf]
      %v94 = vld [vmem:[#allocation7 + $0x18] sm:$0xf]
      %v95 = vld [vmem:[#allocation7 + $0x1c] sm:$0xf]
      %v96 = vld [vmem:[#allocation7 + $0x20] sm:$0xf]
      %v97 = vld [vmem:[#allocation7 + $0x24] sm:$0xf]
      %v98 = vld [vmem:[#allocation7 + $0x28] sm:$0xf]
      %v99 = vld [vmem:[#allocation7 + $0x2c] sm:$0xf]
      %v100 = vld [vmem:[#allocation7 + $0x30] sm:$0xf]
      %v101 = vld [vmem:[#allocation7 + $0x34] sm:$0xf]
      %v102 = vld [vmem:[#allocation7 + $0x38] sm:$0xf]
      %v103 = vld [vmem:[#allocation7 + $0x3c] sm:$0xf]
      %v104 = vld [vmem:[%s2] sm:$0x1]
      %v106 = vperm.slane %v104, 0
      %v110 = vunpack.c.l.b16 %v86
      %v111 = vunpack.c.l.b16 %v87
      %v112 = vpack.c.b16 %v111, %v110
      %v130 = vunpack.c.l.b16 %v88
      %v131 = vunpack.c.l.b16 %v89
      %v132 = vunpack.c.l.b16 %v90
      %v133 = vunpack.c.l.b16 %v91
      %v134 = vunpack.c.l.b16 %v92
      %v135 = vunpack.c.l.b16 %v93
      %v136 = vunpack.c.l.b16 %v94
      %v137 = vunpack.c.l.b16 %v95
      %v138 = vunpack.c.l.b16 %v96
      %v139 = vunpack.c.l.b16 %v97
      %v140 = vunpack.c.l.b16 %v98
      %v141 = vunpack.c.l.b16 %v99
      %v142 = vunpack.c.l.b16 %v100
      %v143 = vunpack.c.l.b16 %v101
      %v144 = vunpack.c.l.b16 %v102
      %v145 = vunpack.c.l.b16 %v103
      %v146 = vpack.c.b16 %v131, %v130
      %v147 = vpack.c.b16 %v133, %v132
      %v148 = vpack.c.b16 %v135, %v134
      %v149 = vpack.c.b16 %v137, %v136
      %v150 = vpack.c.b16 %v139, %v138
      %v151 = vpack.c.b16 %v141, %v140
      %v152 = vpack.c.b16 %v143, %v142
      %v153 = vpack.c.b16 %v145, %v144
      %162 = vmatpush.bf16.xpose.msra.mxu0 %v153
      %163 = vmatpush.bf16.xpose.msra.mxu0 %v152
      %164 = vmatpush.bf16.xpose.msra.mxu0 %v151
      %165 = vmatpush.bf16.xpose.msra.mxu0 %v150
      %166 = vmatpush.bf16.xpose.msra.mxu0 %v149
      %167 = vmatpush.bf16.xpose.msra.mxu0 %v148
      %168 = vmatpush.bf16.xpose.msra.mxu0 %v147
      %169 = vmatpush.bf16.xpose.msra.mxu0 %v146
      %170 = vmatmul.bf16.gmra.mxu0 %v112
      %v171 = vpop.f32.mrf.mxu0
      %v172 = vadd.f32 %v106, %v171
      %v173 = vpop.f32.mrf.mxu0
      %v174 = vadd.f32 %v106, %v173
      %175 = vdwg.mxu0
      %v176 = vmul.f32 %v172, 0.5
      %v177 = vmul.f32 %v174, 0.5
      %v178 = vmul.f32 %v172, 0.70710677
      %v179 = vmul.f32 %v174, 0.70710677
      %v180 = vmul.f32 %v178, %v178
      %v181 = vmin.f32 16.0, %v180
      %v182 = vmul.f32 %v181, 2.1237322e-06
      %v183 = vadd.f32 %v182, 0.00028619796
      %v184 = vmul.f32 %v181, %v183
      %v185 = vadd.f32 %v184, 0.0036580483
      %v186 = vmul.f32 %v181, %v185
      %v187 = vadd.f32 %v186, 0.05243302
      %v188 = vmul.f32 %v181, %v187
      %v189 = vadd.f32 %v188, 0.18741608
      %v190 = vmul.f32 %v181, %v189
      %v191 = vadd.f32 %v190, 1.1283791
      %v192 = vmul.f32 %v178, %v191
      %v193 = vmul.f32 %v181, 3.8918573e-05
      %v194 = vadd.f32 %v193, 0.001143296
      %v195 = vmul.f32 %v181, %v194
      %v196 = vadd.f32 %v195, 0.014752088
      %v197 = vmul.f32 %v181, %v196
      %v198 = vadd.f32 %v197, 0.112945676
      %v199 = vmul.f32 %v181, %v198
      %v200 = vadd.f32 %v199, 0.4994258
      %v201 = vmul.f32 %v181, %v200
      %v202 = vadd.f32 %v201, 1.0
      %v203 = vrcp.pop %v202
      %v204 = vmul.f32 %v202, %v203
      %v205 = vsub.f32 1.0, %v204
      %v206 = vmul.f32 %v203, %v205
      %v207 = vadd.f32 %v203, %v206
      %vm208 = vweird.f32 %v202
      %vm209 = vweird.f32 %v203
      %vm210 = vmor %vm208, %vm209
      %v211 = vsel %vm210, %v203, %v207
      %v212 = vand.u32 2147483647, %v202
      %vm213 = vcmp.eq.f32.partialorder %v212, 8.507059e+37
      %v214 = vand.u32 %v202, 2147483648
      %v215 = vor.u32 1.1754944e-38, %v214
      %v216 = vsel %vm213, %v215, %v211
      %v217 = vmul.f32 %v192, %v216
      %v218 = vmin.f32 %v217, 1.0
      %v219 = vmax.f32 %v218, -1.0
      %v220 = vmul.f32 %v179, %v179
      %v221 = vmin.f32 16.0, %v220
      %v222 = vmul.f32 %v221, 2.1237322e-06
      %v223 = vadd.f32 %v222, 0.00028619796
      %v224 = vmul.f32 %v221, %v223
      %v225 = vadd.f32 %v224, 0.0036580483
      %v226 = vmul.f32 %v221, %v225
      %v227 = vadd.f32 %v226, 0.05243302
      %v228 = vmul.f32 %v221, %v227
      %v229 = vadd.f32 %v228, 0.18741608
      %v230 = vmul.f32 %v221, %v229
      %v231 = vadd.f32 %v230, 1.1283791
      %v232 = vmul.f32 %v179, %v231
      %v233 = vmul.f32 %v221, 3.8918573e-05
      %v234 = vadd.f32 %v233, 0.001143296
      %v235 = vmul.f32 %v221, %v234
      %v236 = vadd.f32 %v235, 0.014752088
      %v237 = vmul.f32 %v221, %v236
      %v238 = vadd.f32 %v237, 0.112945676
      %v239 = vmul.f32 %v221, %v238
      %v240 = vadd.f32 %v239, 0.4994258
      %v241 = vmul.f32 %v221, %v240
      %v242 = vadd.f32 %v241, 1.0
      %v243 = vrcp.pop %v242
      %v244 = vmul.f32 %v242, %v243
      %v245 = vsub.f32 1.0, %v244
      %v246 = vmul.f32 %v243, %v245
      %v247 = vadd.f32 %v243, %v246
      %vm248 = vweird.f32 %v242
      %vm249 = vweird.f32 %v243
      %vm250 = vmor %vm248, %vm249
      %v251 = vsel %vm250, %v243, %v247
      %v252 = vand.u32 2147483647, %v242
      %vm253 = vcmp.eq.f32.partialorder %v252, 8.507059e+37
      %v254 = vand.u32 %v242, 2147483648
      %v255 = vor.u32 1.1754944e-38, %v254
      %v256 = vsel %vm253, %v255, %v251
      %v257 = vmul.f32 %v232, %v256
      %v258 = vmin.f32 %v257, 1.0
      %v259 = vmax.f32 %v258, -1.0
      %v260 = vadd.f32 %v219, 1.0
      %v261 = vadd.f32 %v259, 1.0
      %v262 = vmul.f32 %v176, %v260
      %v263 = vmul.f32 %v177, %v261
      %v264 = vpack.c.bf16 %v262, %v262
      %v265 = vpack.c.bf16 %v263, %v263
      %s266 = smul.u32 0, 2
      %s267 = smul.addr %s266, 4
      %s268 = scalar_lea.vmem [#allocation2], %s267
      %269 = vst [vmem:[%s268] sm:$0xf] %v264
      %270 = vst [vmem:[%s268 + $0x4] sm:$0xf] %v265
    $region41: #{tpu_custom_call.1} parent=1 // pred_fallthru
      _
    %v271 = vld [vmem:[#allocation3] sm:$0xff]
    %v272 = vld [vmem:[#allocation3 + $0x8] sm:$0xff]
    %s273 = smul.u32 0, 2
    %s274 = smul.addr %s273, 4
    %s275 = scalar_lea.vmem [#allocation2], %s274
    %v276 = vld [vmem:[%s275] sm:$0xf]
    %v277 = vld [vmem:[%s275 + $0x4] sm:$0xf]
    %v278 = vld [vmem:[#allocation9] sm:$0xf]
    %v279 = vld [vmem:[#allocation9 + $0x4] sm:$0xf]
    %v280 = vld [vmem:[#allocation9 + $0x8] sm:$0xf]
    %v281 = vld [vmem:[#allocation9 + $0xc] sm:$0xf]
    %v282 = vld [vmem:[#allocation9 + $0x10] sm:$0xf]
    %v283 = vld [vmem:[#allocation9 + $0x14] sm:$0xf]
    %v284 = vld [vmem:[#allocation9 + $0x18] sm:$0xf]
    %v285 = vld [vmem:[#allocation9 + $0x1c] sm:$0xf]
    %v286 = vld [vmem:[#allocation9 + $0x20] sm:$0xf]
    %v287 = vld [vmem:[#allocation9 + $0x24] sm:$0xf]
    %v288 = vld [vmem:[#allocation9 + $0x28] sm:$0xf]
    %v289 = vld [vmem:[#allocation9 + $0x2c] sm:$0xf]
    %v290 = vld [vmem:[#allocation9 + $0x30] sm:$0xf]
    %v291 = vld [vmem:[#allocation9 + $0x34] sm:$0xf]
    %v292 = vld [vmem:[#allocation9 + $0x38] sm:$0xf]
    %v293 = vld [vmem:[#allocation9 + $0x3c] sm:$0xf]
    %v296 = vunpack.c.l.b16 %v276
    %v297 = vunpack.c.l.b16 %v277
    %v298 = vpack.c.b16 %v297, %v296
    %v316 = vunpack.c.l.b16 %v278
    %v317 = vunpack.c.l.b16 %v279
    %v318 = vunpack.c.l.b16 %v280
    %v319 = vunpack.c.l.b16 %v281
    %v320 = vunpack.c.l.b16 %v282
    %v321 = vunpack.c.l.b16 %v283
    %v322 = vunpack.c.l.b16 %v284
    %v323 = vunpack.c.l.b16 %v285
    %v324 = vunpack.c.l.b16 %v286
    %v325 = vunpack.c.l.b16 %v287
    %v326 = vunpack.c.l.b16 %v288
    %v327 = vunpack.c.l.b16 %v289
    %v328 = vunpack.c.l.b16 %v290
    %v329 = vunpack.c.l.b16 %v291
    %v330 = vunpack.c.l.b16 %v292
    %v331 = vunpack.c.l.b16 %v293
    %v332 = vpack.c.b16 %v317, %v316
    %v333 = vpack.c.b16 %v319, %v318
    %v334 = vpack.c.b16 %v321, %v320
    %v335 = vpack.c.b16 %v323, %v322
    %v336 = vpack.c.b16 %v325, %v324
    %v337 = vpack.c.b16 %v327, %v326
    %v338 = vpack.c.b16 %v329, %v328
    %v339 = vpack.c.b16 %v331, %v330
    %348 = vmatpush.bf16.xpose.msra.mxu0 %v339
    %349 = vmatpush.bf16.xpose.msra.mxu0 %v338
    %350 = vmatpush.bf16.xpose.msra.mxu0 %v337
    %351 = vmatpush.bf16.xpose.msra.mxu0 %v336
    %352 = vmatpush.bf16.xpose.msra.mxu0 %v335
    %353 = vmatpush.bf16.xpose.msra.mxu0 %v334
    %354 = vmatpush.bf16.xpose.msra.mxu0 %v333
    %355 = vmatpush.bf16.xpose.msra.mxu0 %v332
    %356 = vmatmul.bf16.gmra.mxu0 %v298
    %v357 = vpop.f32.mrf.mxu0
    %v358 = vadd.f32 0.0, %v357
    %v359 = vpop.f32.mrf.mxu0
    %v360 = vadd.f32 0.0, %v359
    %361 = vdwg.mxu0
    %v362 = vadd.f32 %v271, %v358
    %v363 = vadd.f32 %v272, %v360
    %364 = vst [vmem:[#allocation3] sm:$0xff] %v362
    %365 = vst [vmem:[#allocation3 + $0x8] sm:$0xff] %v363
    // Predicated region
    $region42: #{tpu_custom_call.1} parent=1 // pred_check
      %p366 = pneg %p76
    $region43: #{tpu_custom_call.1} parent=1 // pred_check_branch
      %368 = sbr.rel (%p366) target = $region45
    $region44: #{tpu_custom_call.1} parent=1 // pred_region
      %v369 = vld [vmem:[#allocation3] sm:$0xff]
      %v370 = vld [vmem:[#allocation3 + $0x8] sm:$0xff]
      %v371 = vld [vmem:[%s4] sm:$0x1]
      %v373 = vperm.slane %v371, 0
      %v375 = vadd.f32 %v369, %v373
      %v376 = vadd.f32 %v370, %v373
      %377 = vst [vmem:[#allocation10] sm:$0xff] %v375
      %378 = vst [vmem:[#allocation10 + $0x8] sm:$0xff] %v376
    $region45: #{tpu_custom_call.1} parent=1 // pred_fallthru
      _
    // Predicated region
    $region46: #{tpu_custom_call.1} parent=1 // pred_check
      _
    $region47: #{tpu_custom_call.1} parent=1 // pred_check_branch
      %380 = sbr.rel (0) target = $region49
    $region48: #{tpu_custom_call.1} parent=1 // pred_region
      %382 = vsyncadd [#allocation6], 0
      %s383 = sshll.u32 [#allocation10], 4
      %s384 = int_to_ptr.vmem [resolvable:$true] %s383
      %s385 = sshll.u32 %s5, 4
      %s386 = int_to_ptr.hbm [resolvable:$true] %s385
      %391 = dma.vmem_to_hbm [thread:$0]  %s384, 256, %s386, [#allocation6], 128, 128, 8
    $region49: #{tpu_custom_call.1} parent=1 // pred_fallthru
      _
    // Predicated region
    $region50: #{tpu_custom_call.1} parent=1 // pred_check
      _
    $region51: #{tpu_custom_call.1} parent=1 // pred_check_branch
      %393 = sbr.rel (0) target = $region53
    $region52: #{tpu_custom_call.1} parent=1 // pred_region
      %395 = dma.done [#allocation6], 256
    $region53: #{tpu_custom_call.1} parent=1 // pred_fallthru
      _
    %396 = vsyncpa [#allocation5], 1
    %397 = vsyncpa [#allocation8], 1
    %398 = vsyncpa [#allocation6], 1

</llo_original>
